<compile_context>
chip_gen: v5e
topology: v5e:2x2
jax: 0.10.0
libtpu: 0.0.40
codegen_flags: <defaults>
</compile_context>

<pallas_src>
import functools

import jax
import jax.numpy as jnp
from jax.experimental import pallas as pl
from jax.experimental.pallas import tpu as pltpu


# ----------------------------------------------------------------------------
# Kernel
# ----------------------------------------------------------------------------
def _br_kernel(x_ref, w1_ref, b1_ref, w2_ref, b2_ref, out_ref,
               *, H, W, C, use_bf16):
    """One grid step: `bt` images in lane-dense packed (H, W*C) layout.

    Block shapes:
      x_ref   : (bt, H, W*C)     packed NHWC activations
      w*_ref  : (3, W*C, W*C)    block-tridiagonal tap weights, one per kh
      b*_ref  : (1, W*C)         bias tiled across W (f32)
      out_ref : (bt, H, W*C)
    """
    bt = out_ref.shape[0]
    WC = W * C
    M = bt * H
    cdt = jnp.bfloat16 if use_bf16 else jnp.float32

    def conv3x3(act_f32, wband_ref, b_ref):
        # act_f32: (bt, H, WC) f32.  The banded weights already encode the
        # horizontal (kw) sweep and its SAME padding, so only a 1-row zero
        # pad along the sublane (H) axis is needed; lanes stay at exactly 128.
        act = act_f32.astype(cdt) if use_bf16 else act_f32      # one cast/conv
        zrow = jnp.zeros((bt, 1, WC), cdt)
        xpad = jnp.concatenate([zrow, act, zrow], axis=1)        # (bt, H+2, WC)

        # Bias-initialized f32 accumulator (hoisted broadcast, outside loop).
        acc = jnp.broadcast_to(b_ref[...], (M, WC))
        for kh in range(3):                                      # 3 MXU pushes
            lhs = xpad[:, kh:kh + H, :].reshape(M, WC)           # row-shifted LHS
            acc = acc + jnp.dot(lhs, wband_ref[kh],
                                preferred_element_type=jnp.float32)
        return acc                                               # (M, WC) f32

    xp = x_ref[...].astype(jnp.float32)                          # (bt, H, WC)
    h1 = jnp.maximum(conv3x3(xp, w1_ref, b1_ref), 0.0)           # relu(conv1)
    y = conv3x3(h1.reshape(bt, H, WC), w2_ref, b2_ref)           # conv2
    out_ref[...] = (xp + y.reshape(bt, H, WC)).astype(out_ref.dtype)


# ----------------------------------------------------------------------------
# One-time parameter preprocessing (NOT per forward call)
# ----------------------------------------------------------------------------
def _banded_taps(w_hwio, W):
    """(3,3,C,C) HWIO -> (3, W*C, W*C) block-tridiagonal tap matrices.

    Tap kh is B_kh with block (w_in, w_out) = W[kh, w_in - w_out + 1] for
    |w_in - w_out| <= 1 and zero otherwise, so one matmul of packed (H, W*C)
    rows against B_kh performs the full kw sweep; the missing off-band blocks
    ARE the horizontal zero padding.
    """
    C = w_hwio.shape[2]
    taps = []
    for kh in range(3):
        band = jnp.zeros((W, C, W, C), w_hwio.dtype)
        for kw in range(3):
            # select (w_in, w_out) pairs with w_in - w_out == kw - 1
            sel = jnp.eye(W, k=1 - kw, dtype=w_hwio.dtype)       # sel[w_in,w_out]
            band = band + jnp.einsum('wv,io->wivo', sel, w_hwio[kh, kw])
        taps.append(band.reshape(W * C, W * C))
    return jnp.stack(taps, axis=0)                                # (3, WC, WC)


def prepare_br_params(w1, b1, w2, b2, *, W, use_bf16_mxu=False):
    """Build kernel-side parameters once (banded weights, tiled biases)."""
    C = w1.shape[2]
    WC = W * C
    w1b = _banded_taps(w1, W)
    w2b = _banded_taps(w2, W)
    if use_bf16_mxu:                       # v6e / v7x: bf16 MXU operands
        w1b = w1b.astype(jnp.bfloat16)
        w2b = w2b.astype(jnp.bfloat16)
    b1p = jnp.tile(b1, W).reshape(1, WC).astype(jnp.float32)
    b2p = jnp.tile(b2, W).reshape(1, WC).astype(jnp.float32)
    return dict(w1b=w1b, b1p=b1p, w2b=w2b, b2p=b2p,
                W=W, C=C, use_bf16=use_bf16_mxu)


# ----------------------------------------------------------------------------
# Forward wrappers
# ----------------------------------------------------------------------------
def _default_batch_tile(N, H):
    """Largest divisor of N with bt*H <= ~128 (fills the MXU row dimension)."""
    target = max(1, 128 // max(H, 1))
    best = 1
    for d in range(1, N + 1):
        if N % d == 0 and d <= target:
            best = d
    return best


def br_forward_nhwc(x_nhwc, params, *, batch_tile=None):
    """x_nhwc: (N,H,W,C) f32.  Activations stay NHWC / lane-packed."""
    N, H, W, C = x_nhwc.shape
    assert W == params["W"] and C == params["C"], "params built for other shape"
    WC = W * C
    assert WC % 128 == 0, (
        "lane-dense packing requires W*C to be a multiple of 128 "
        "(tile W or fall back to im2col otherwise)")
    if batch_tile is None:
        batch_tile = _default_batch_tile(N, H)
    assert N % batch_tile == 0, "batch_tile must divide N"

    x_packed = x_nhwc.reshape(N, H, WC)          # contiguous view, free in HBM
    kernel = functools.partial(_br_kernel, H=H, W=W, C=C,
                               use_bf16=params["use_bf16"])

    y_packed = pl.pallas_call(
        kernel,
        out_shape=jax.ShapeDtypeStruct((N, H, WC), x_nhwc.dtype),
        grid=(N // batch_tile,),
        in_specs=[
            pl.BlockSpec((batch_tile, H, WC), lambda n: (n, 0, 0)),
            pl.BlockSpec((3, WC, WC), lambda n: (0, 0, 0)),   # fetched once
            pl.BlockSpec((1, WC), lambda n: (0, 0)),
            pl.BlockSpec((3, WC, WC), lambda n: (0, 0, 0)),   # fetched once
            pl.BlockSpec((1, WC), lambda n: (0, 0)),
        ],
        out_specs=pl.BlockSpec((batch_tile, H, WC), lambda n: (n, 0, 0)),
        compiler_params=pltpu.CompilerParams(
            dimension_semantics=("parallel",)),
    )(x_packed, params["w1b"], params["b1p"], params["w2b"], params["b2p"])

    return y_packed.reshape(N, H, W, C)


def br_forward_nchw(x_nchw, params, **kwargs):
    """Drop-in PyTorch-convention entry point (x is NCHW).

    Note: in a real network do this layout change ONCE for the whole layer
    stack, not per BR block — the transposes cost more HBM traffic than the
    kernel itself.
    """
    x_nhwc = jnp.transpose(x_nchw, (0, 2, 3, 1))
    y_nhwc = br_forward_nhwc(x_nhwc, params, **kwargs)
    return jnp.transpose(y_nhwc, (0, 3, 1, 2))


# ----------------------------------------------------------------------------
# Reference + self-test
# ----------------------------------------------------------------------------
def _reference_nhwc(x_nhwc, w1, b1, w2, b2):
    dn = ("NHWC", "HWIO", "NHWC")
    out = jax.lax.conv_general_dilated(x_nhwc, w1, (1, 1), "SAME",
                                       dimension_numbers=dn) + b1
    out = jnp.maximum(out, 0.0)
    out = jax.lax.conv_general_dilated(out, w2, (1, 1), "SAME",
                                       dimension_numbers=dn) + b2
    return x_nhwc + out


if __name__ == "__main__":
    # planes=8, 16x16 spatial -> W*C = 128 (exact lane-dense packing).
    # N=16 with batch_tile=8 gives M = bt*H = 128 (MXU row fill) and a grid of
    # length 2 ("parallel" -> both v7x TensorCores busy).  Still tiny (256 KiB).
    N, C, H, W = 16, 8, 16, 16
    key = jax.random.PRNGKey(0)
    kx, kw1, kb1, kw2, kb2 = jax.random.split(key, 5)

    x_nchw = jax.random.normal(kx, (N, C, H, W), jnp.float32)   # PyTorch layout
    fan_in = C * 3 * 3
    bound = 1.0 / (fan_in ** 0.5)
    w1 = jax.random.uniform(kw1, (3, 3, C, C), jnp.float32, -bound, bound)
    b1 = jax.random.uniform(kb1, (C,), jnp.float32, -bound, bound)
    w2 = jax.random.uniform(kw2, (3, 3, C, C), jnp.float32, -bound, bound)
    b2 = jax.random.uniform(kb2, (C,), jnp.float32, -bound, bound)

    # One-time parameter preprocessing + one-time layout change to NHWC
    # (in a real network both happen once per model, not per BR block).
    params = prepare_br_params(w1, b1, w2, b2, W=W, use_bf16_mxu=False)
    x_nhwc = jnp.transpose(x_nchw, (0, 2, 3, 1))

    y_nhwc = br_forward_nhwc(x_nhwc, params, batch_tile=8)
    y_nhwc = jax.block_until_ready(y_nhwc)

    # Correctness vs. the XLA conv reference (f32 path, tight tolerance).
    y_ref = _reference_nhwc(x_nhwc, w1, b1, w2, b2)
    assert jnp.allclose(y_nhwc, y_ref, atol=1e-4, rtol=1e-4), \
        "mismatch vs reference"

    print("KERNEL_OK")
</pallas_src>

<mosaic_0001>
module attributes {stable_mosaic.version = 11 : i64} {
  func.func @_br_kernel(%arg0: i32, %arg1: memref<8x16x128xf32, #tpu.memory_space<vmem>>, %arg2: memref<3x128x128xf32, #tpu.memory_space<vmem>>, %arg3: memref<1x128xf32, #tpu.memory_space<vmem>>, %arg4: memref<3x128x128xf32, #tpu.memory_space<vmem>>, %arg5: memref<1x128xf32, #tpu.memory_space<vmem>>, %arg6: memref<8x16x128xf32, #tpu.memory_space<vmem>>) attributes {dimension_semantics = [#tpu.dimension_semantics<parallel>], iteration_bounds = array<i64: 2>, scalar_prefetch = 0 : i64, scratch_operands = 0 : i64, tpu.core_type = #tpu.core_type<tc>, window_params = [{transform_indices = @transform_0, window_bounds = array<i64: 8, 16, 128>}, {pipeline_mode = #tpu.pipeline_mode<synchronous>, transform_indices = @transform_1, window_bounds = array<i64: 3, 128, 128>}, {pipeline_mode = #tpu.pipeline_mode<synchronous>, transform_indices = @transform_2, window_bounds = array<i64: 1, 128>}, {pipeline_mode = #tpu.pipeline_mode<synchronous>, transform_indices = @transform_3, window_bounds = array<i64: 3, 128, 128>}, {pipeline_mode = #tpu.pipeline_mode<synchronous>, transform_indices = @transform_4, window_bounds = array<i64: 1, 128>}, {transform_indices = @transform_5, window_bounds = array<i64: 8, 16, 128>}]} {
    %c0 = arith.constant 0 : index
    %c0_0 = arith.constant 0 : index
    %c0_1 = arith.constant 0 : index
    %0 = vector.load %arg1[%c0, %c0_0, %c0_1] : memref<8x16x128xf32, #tpu.memory_space<vmem>>, vector<8x16x128xf32>
    %cst = arith.constant 0.000000e+00 : f32
    %1 = vector.broadcast %cst : f32 to vector<8x1x128xf32>
    %2 = tpu.concatenate %1, %0, %1 in 1 : vector<8x1x128xf32>, vector<8x16x128xf32>, vector<8x1x128xf32> -> vector<8x18x128xf32>
    %c0_2 = arith.constant 0 : index
    %c0_3 = arith.constant 0 : index
    %3 = vector.load %arg3[%c0_2, %c0_3] : memref<1x128xf32, #tpu.memory_space<vmem>>, vector<1x128xf32>
    %4 = vector.shape_cast %3 : vector<1x128xf32> to vector<1x128xf32>
    %5 = vector.broadcast %4 : vector<1x128xf32> to vector<128x128xf32>
    %6 = vector.extract_strided_slice %2 {offsets = [0, 0, 0], sizes = [8, 16, 128], strides = [1, 1, 1]} : vector<8x18x128xf32> to vector<8x16x128xf32>
    %7 = vector.shape_cast %6 : vector<8x16x128xf32> to vector<128x128xf32>
    %c0_4 = arith.constant 0 : index
    %c0_5 = arith.constant 0 : index
    %c0_6 = arith.constant 0 : index
    %8 = vector.load %arg2[%c0_4, %c0_5, %c0_6] : memref<3x128x128xf32, #tpu.memory_space<vmem>>, vector<1x128x128xf32>
    %9 = vector.shape_cast %8 : vector<1x128x128xf32> to vector<128x128xf32>
    %cst_7 = arith.constant dense<0.000000e+00> : vector<128x128xf32>
    %10 = tpu.matmul %7, %9, %cst_7 {dimension_numbers = #tpu.dot_dimension_numbers<[1], [0], [0], [1], [0, 0, 1, 1], [], []>} : vector<128x128xf32>, vector<128x128xf32>, vector<128x128xf32> -> vector<128x128xf32>
    %11 = arith.addf %5, %10 : vector<128x128xf32>
    %12 = vector.extract_strided_slice %2 {offsets = [0, 1, 0], sizes = [8, 16, 128], strides = [1, 1, 1]} : vector<8x18x128xf32> to vector<8x16x128xf32>
    %13 = vector.shape_cast %12 : vector<8x16x128xf32> to vector<128x128xf32>
    %c1 = arith.constant 1 : index
    %c0_8 = arith.constant 0 : index
    %c0_9 = arith.constant 0 : index
    %14 = vector.load %arg2[%c1, %c0_8, %c0_9] : memref<3x128x128xf32, #tpu.memory_space<vmem>>, vector<1x128x128xf32>
    %15 = vector.shape_cast %14 : vector<1x128x128xf32> to vector<128x128xf32>
    %cst_10 = arith.constant dense<0.000000e+00> : vector<128x128xf32>
    %16 = tpu.matmul %13, %15, %cst_10 {dimension_numbers = #tpu.dot_dimension_numbers<[1], [0], [0], [1], [0, 0, 1, 1], [], []>} : vector<128x128xf32>, vector<128x128xf32>, vector<128x128xf32> -> vector<128x128xf32>
    %17 = arith.addf %11, %16 : vector<128x128xf32>
    %18 = vector.extract_strided_slice %2 {offsets = [0, 2, 0], sizes = [8, 16, 128], strides = [1, 1, 1]} : vector<8x18x128xf32> to vector<8x16x128xf32>
    %19 = vector.shape_cast %18 : vector<8x16x128xf32> to vector<128x128xf32>
    %c2 = arith.constant 2 : index
    %c0_11 = arith.constant 0 : index
    %c0_12 = arith.constant 0 : index
    %20 = vector.load %arg2[%c2, %c0_11, %c0_12] : memref<3x128x128xf32, #tpu.memory_space<vmem>>, vector<1x128x128xf32>
    %21 = vector.shape_cast %20 : vector<1x128x128xf32> to vector<128x128xf32>
    %cst_13 = arith.constant dense<0.000000e+00> : vector<128x128xf32>
    %22 = tpu.matmul %19, %21, %cst_13 {dimension_numbers = #tpu.dot_dimension_numbers<[1], [0], [0], [1], [0, 0, 1, 1], [], []>} : vector<128x128xf32>, vector<128x128xf32>, vector<128x128xf32> -> vector<128x128xf32>
    %23 = arith.addf %17, %22 : vector<128x128xf32>
    %cst_14 = arith.constant 0.000000e+00 : f32
    %24 = vector.broadcast %cst_14 : f32 to vector<128x128xf32>
    %25 = arith.maximumf %23, %24 : vector<128x128xf32>
    %26 = vector.shape_cast %25 : vector<128x128xf32> to vector<8x16x128xf32>
    %cst_15 = arith.constant 0.000000e+00 : f32
    %27 = vector.broadcast %cst_15 : f32 to vector<8x1x128xf32>
    %28 = tpu.concatenate %27, %26, %27 in 1 : vector<8x1x128xf32>, vector<8x16x128xf32>, vector<8x1x128xf32> -> vector<8x18x128xf32>
    %c0_16 = arith.constant 0 : index
    %c0_17 = arith.constant 0 : index
    %29 = vector.load %arg5[%c0_16, %c0_17] : memref<1x128xf32, #tpu.memory_space<vmem>>, vector<1x128xf32>
    %30 = vector.shape_cast %29 : vector<1x128xf32> to vector<1x128xf32>
    %31 = vector.broadcast %30 : vector<1x128xf32> to vector<128x128xf32>
    %32 = vector.extract_strided_slice %28 {offsets = [0, 0, 0], sizes = [8, 16, 128], strides = [1, 1, 1]} : vector<8x18x128xf32> to vector<8x16x128xf32>
    %33 = vector.shape_cast %32 : vector<8x16x128xf32> to vector<128x128xf32>
    %c0_18 = arith.constant 0 : index
    %c0_19 = arith.constant 0 : index
    %c0_20 = arith.constant 0 : index
    %34 = vector.load %arg4[%c0_18, %c0_19, %c0_20] : memref<3x128x128xf32, #tpu.memory_space<vmem>>, vector<1x128x128xf32>
    %35 = vector.shape_cast %34 : vector<1x128x128xf32> to vector<128x128xf32>
    %cst_21 = arith.constant dense<0.000000e+00> : vector<128x128xf32>
    %36 = tpu.matmul %33, %35, %cst_21 {dimension_numbers = #tpu.dot_dimension_numbers<[1], [0], [0], [1], [0, 0, 1, 1], [], []>} : vector<128x128xf32>, vector<128x128xf32>, vector<128x128xf32> -> vector<128x128xf32>
    %37 = arith.addf %31, %36 : vector<128x128xf32>
    %38 = vector.extract_strided_slice %28 {offsets = [0, 1, 0], sizes = [8, 16, 128], strides = [1, 1, 1]} : vector<8x18x128xf32> to vector<8x16x128xf32>
    %39 = vector.shape_cast %38 : vector<8x16x128xf32> to vector<128x128xf32>
    %c1_22 = arith.constant 1 : index
    %c0_23 = arith.constant 0 : index
    %c0_24 = arith.constant 0 : index
    %40 = vector.load %arg4[%c1_22, %c0_23, %c0_24] : memref<3x128x128xf32, #tpu.memory_space<vmem>>, vector<1x128x128xf32>
    %41 = vector.shape_cast %40 : vector<1x128x128xf32> to vector<128x128xf32>
    %cst_25 = arith.constant dense<0.000000e+00> : vector<128x128xf32>
    %42 = tpu.matmul %39, %41, %cst_25 {dimension_numbers = #tpu.dot_dimension_numbers<[1], [0], [0], [1], [0, 0, 1, 1], [], []>} : vector<128x128xf32>, vector<128x128xf32>, vector<128x128xf32> -> vector<128x128xf32>
    %43 = arith.addf %37, %42 : vector<128x128xf32>
    %44 = vector.extract_strided_slice %28 {offsets = [0, 2, 0], sizes = [8, 16, 128], strides = [1, 1, 1]} : vector<8x18x128xf32> to vector<8x16x128xf32>
    %45 = vector.shape_cast %44 : vector<8x16x128xf32> to vector<128x128xf32>
    %c2_26 = arith.constant 2 : index
    %c0_27 = arith.constant 0 : index
    %c0_28 = arith.constant 0 : index
    %46 = vector.load %arg4[%c2_26, %c0_27, %c0_28] : memref<3x128x128xf32, #tpu.memory_space<vmem>>, vector<1x128x128xf32>
    %47 = vector.shape_cast %46 : vector<1x128x128xf32> to vector<128x128xf32>
    %cst_29 = arith.constant dense<0.000000e+00> : vector<128x128xf32>
    %48 = tpu.matmul %45, %47, %cst_29 {dimension_numbers = #tpu.dot_dimension_numbers<[1], [0], [0], [1], [0, 0, 1, 1], [], []>} : vector<128x128xf32>, vector<128x128xf32>, vector<128x128xf32> -> vector<128x128xf32>
    %49 = arith.addf %43, %48 : vector<128x128xf32>
    %50 = vector.shape_cast %49 : vector<128x128xf32> to vector<8x16x128xf32>
    %51 = arith.addf %0, %50 : vector<8x16x128xf32>
    %c0_30 = arith.constant 0 : index
    %c0_31 = arith.constant 0 : index
    %c0_32 = arith.constant 0 : index
    %52 = vector.load %arg6[%c0_30, %c0_31, %c0_32] : memref<8x16x128xf32, #tpu.memory_space<vmem>>, vector<8x16x128xf32>
    tpu.vector_store %arg6[%c0_30, %c0_31, %c0_32], %51 {strides = array<i32>} : memref<8x16x128xf32, #tpu.memory_space<vmem>>, vector<8x16x128xf32>,
    return
  }
  func.func @transform_0(%arg0: i32) -> (i32, i32, i32) {
    %c0_i32 = arith.constant 0 : i32
    %c0_i32_0 = arith.constant 0 : i32
    %c0_i32_1 = arith.constant 0 : i32
    return %arg0, %c0_i32, %c0_i32_0 : i32, i32, i32
  }
  func.func @transform_1(%arg0: i32) -> (i32, i32, i32) {
    %c0_i32 = arith.constant 0 : i32
    %c0_i32_0 = arith.constant 0 : i32
    %c0_i32_1 = arith.constant 0 : i32
    %c0_i32_2 = arith.constant 0 : i32
    return %c0_i32, %c0_i32_0, %c0_i32_1 : i32, i32, i32
  }
  func.func @transform_2(%arg0: i32) -> (i32, i32) {
    %c0_i32 = arith.constant 0 : i32
    %c0_i32_0 = arith.constant 0 : i32
    %c0_i32_1 = arith.constant 0 : i32
    return %c0_i32, %c0_i32_0 : i32, i32
  }
  func.func @transform_3(%arg0: i32) -> (i32, i32, i32) {
    %c0_i32 = arith.constant 0 : i32
    %c0_i32_0 = arith.constant 0 : i32
    %c0_i32_1 = arith.constant 0 : i32
    %c0_i32_2 = arith.constant 0 : i32
    return %c0_i32, %c0_i32_0, %c0_i32_1 : i32, i32, i32
  }
  func.func @transform_4(%arg0: i32) -> (i32, i32) {
    %c0_i32 = arith.constant 0 : i32
    %c0_i32_0 = arith.constant 0 : i32
    %c0_i32_1 = arith.constant 0 : i32
    return %c0_i32, %c0_i32_0 : i32, i32
  }
  func.func @transform_5(%arg0: i32) -> (i32, i32, i32) {
    %c0_i32 = arith.constant 0 : i32
    %c0_i32_0 = arith.constant 0 : i32
    %c0_i32_1 = arith.constant 0 : i32
    return %arg0, %c0_i32, %c0_i32_0 : i32, i32, i32
  }
}

</mosaic_0001>

<llo_original>
// kernel: tpu_custom_call.1
$region0: #{tpu_custom_call.1}
  #allocation0 [shape = 'u32[]', space=smem, size = 0x4, offset = 0x4, fixed_abs, tag = 'smem constant byte address 0x4 - core index']
  #allocation1 [shape = 'u32[72,128]{1,0:T(1,128)}', space=vmem, size = 0x9000, scoped, tag = 'internal scratch']
  %s0 = inlined_call_operand.hbm [shape: f32[16,16,128], index: 0, kind: input, shape index: {}]
  %s1 = inlined_call_operand.hbm [shape: f32[3,128,128], index: 1, kind: input, shape index: {}]
  %s2 = inlined_call_operand.vmem [shape: f32[1,128], index: 2, kind: input, shape index: {}]
  %s3 = inlined_call_operand.hbm [shape: f32[3,128,128], index: 3, kind: input, shape index: {}]
  %s4 = inlined_call_operand.vmem [shape: f32[1,128], index: 4, kind: input, shape index: {}]
  %s5 = inlined_call_operand.hbm [shape: f32[16,16,128], index: 5, kind: output, shape index: {}]
  %s6 = sld [smem:[#allocation0]]
  $region65: #{tpu_custom_call.1} parent=0
    _
  %s8 = ssub.s32 1, %s6
  %s9 = scalar_select 0, %s8, %s6
  $region1: #{tpu_custom_call.1} parent=0
    #allocation2 [shape = 'u8[131072]{0}', space=vmem, size = 0x20000, scoped, tag = 'input window, operand 0']
    #allocation3 [shape = 's32[2]{0}', space=sflag, size = 0x8, scoped, tag = 'scoped memory for tpu_custom_call.1']
    #allocation4 [shape = 's32[2]{0}', space=sflag, size = 0x8, scoped, tag = 'scoped memory for tpu_custom_call.1']
    #allocation5 [shape = 'u8[196608]{0}', space=vmem, size = 0x30000, scoped, tag = 'input window, operand 1, single buffered']
    #allocation6 [shape = 's32[1]{0}', space=sflag, size = 0x4, scoped, tag = 'scoped memory for tpu_custom_call.1']
    #allocation7 [shape = 'u8[196608]{0}', space=vmem, size = 0x30000, scoped, tag = 'input window, operand 3, single buffered']
    #allocation8 [shape = 'u8[131072]{0}', space=vmem, size = 0x20000, scoped, tag = 'output window, operand 0']
    %10 = vsyncpa [#allocation3], 0
    %s11 = scalar_lea.sflag [#allocation3], 1
    %12 = vsyncpa %s11, 0
    %13 = vsyncpa [#allocation6], 0
    %14 = vsyncpa [#allocation4], 0
    %s15 = scalar_lea.sflag [#allocation4], 1
    %16 = vsyncpa %s15, 0
    loop: start=0, step=1, limit=4
    $region2: #{tpu_custom_call.1} parent=1 // loop_pre_header
      _
    $region3: #{tpu_custom_call.1} parent=1 // loop_header
      %s18 = sphi 0, %s22
      %p19 = scmp.ge.s32.totalorder %s18, 4
      %s28 = sphi 0, %s30
      %s31 = sphi 0, %s28
      %s32 = sphi 0, %s31
      %s48 = sphi 0, %s32
      %s52 = sphi 0, %s52
      %s54 = sphi 0, %s52
      %s55 = sphi 0, %s54
      %s69 = sphi 0, %s55
      %s73 = sphi 0, %s73
      %s75 = sphi 0, %s73
      %s76 = sphi 0, %s75
      %s90 = sphi 0, %s76
      %s94 = sphi 0, %s94
      %s96 = sphi 0, %s94
      %s97 = sphi 0, %s96
      %s111 = sphi 0, %s97
      %s115 = sphi 0, %s115
      %s117 = sphi 0, %s115
      %s118 = sphi 0, %s117
      %s132 = sphi 0, %s118
      %s138 = sphi 0, %s140
      %s141 = sphi 0, %s138
      %s142 = sphi 0, %s141
      %s158 = sphi 0, %s142
    $region4: #{tpu_custom_call.1} parent=1 // loop_header_branch
      %21 = sbr.rel (%p19) target = $region8
    $region5: #{tpu_custom_call.1} parent=1 // loop_body
      %s23 = ssub.s32 %s18, 1
      %s24 = ssub.s32 %s18, 2
      %s25 = sadd.s32 %s18, 1
      %s26 = ssub.s32 %s18, %s25
      %p27 = scmp.eq.s32.totalorder %s26, 0
      %s29 = sadd.s32 %s28, 1
      %s30 = scalar_select %p27, %s28, %s29
      %p33 = pneg %p27
      %p34 = scmp.eq.s32.totalorder %s18, 1
      %p35 = por %p33, %p34
      %p36 = scmp.ne.s32.totalorder %s28, %s31
      %p37 = scmp.eq.s32.totalorder %s18, 0
      %p38 = por %p36, %p37
      %p39 = scmp.ne.s32.totalorder %s28, %s31
      %p40 = scmp.eq.s32.totalorder %s23, 1
      %p41 = por %p39, %p40
      %p42 = scmp.ne.s32.totalorder %s31, %s32
      %p43 = scmp.eq.s32.totalorder %s23, 0
      %p44 = por %p42, %p43
      %p45 = scmp.ne.s32.totalorder %s31, %s32
      %p46 = scmp.eq.s32.totalorder %s24, 1
      %p47 = por %p45, %p46
      %p49 = scmp.ne.s32.totalorder %s32, %s48
      %p50 = scmp.eq.s32.totalorder %s24, 0
      %p51 = por %p49, %p50
      %s53 = sadd.s32 %s52, 1
      %p56 = scmp.eq.s32.totalorder %s18, 1
      %p57 = scmp.ne.s32.totalorder %s52, %s54
      %p58 = scmp.eq.s32.totalorder %s18, 0
      %p59 = por %p57, %p58
      %p60 = scmp.ne.s32.totalorder %s52, %s54
      %p61 = scmp.eq.s32.totalorder %s23, 1
      %p62 = por %p60, %p61
      %p63 = scmp.ne.s32.totalorder %s54, %s55
      %p64 = scmp.eq.s32.totalorder %s23, 0
      %p65 = por %p63, %p64
      %p66 = scmp.ne.s32.totalorder %s54, %s55
      %p67 = scmp.eq.s32.totalorder %s24, 1
      %p68 = por %p66, %p67
      %p70 = scmp.ne.s32.totalorder %s55, %s69
      %p71 = scmp.eq.s32.totalorder %s24, 0
      %p72 = por %p70, %p71
      %s74 = sadd.s32 %s73, 1
      %p77 = scmp.eq.s32.totalorder %s18, 1
      %p78 = scmp.ne.s32.totalorder %s73, %s75
      %p79 = scmp.eq.s32.totalorder %s18, 0
      %p80 = por %p78, %p79
      %p81 = scmp.ne.s32.totalorder %s73, %s75
      %p82 = scmp.eq.s32.totalorder %s23, 1
      %p83 = por %p81, %p82
      %p84 = scmp.ne.s32.totalorder %s75, %s76
      %p85 = scmp.eq.s32.totalorder %s23, 0
      %p86 = por %p84, %p85
      %p87 = scmp.ne.s32.totalorder %s75, %s76
      %p88 = scmp.eq.s32.totalorder %s24, 1
      %p89 = por %p87, %p88
      %p91 = scmp.ne.s32.totalorder %s76, %s90
      %p92 = scmp.eq.s32.totalorder %s24, 0
      %p93 = por %p91, %p92
      %s95 = sadd.s32 %s94, 1
      %p98 = scmp.eq.s32.totalorder %s18, 1
      %p99 = scmp.ne.s32.totalorder %s94, %s96
      %p100 = scmp.eq.s32.totalorder %s18, 0
      %p101 = por %p99, %p100
      %p102 = scmp.ne.s32.totalorder %s94, %s96
      %p103 = scmp.eq.s32.totalorder %s23, 1
      %p104 = por %p102, %p103
      %p105 = scmp.ne.s32.totalorder %s96, %s97
      %p106 = scmp.eq.s32.totalorder %s23, 0
      %p107 = por %p105, %p106
      %p108 = scmp.ne.s32.totalorder %s96, %s97
      %p109 = scmp.eq.s32.totalorder %s24, 1
      %p110 = por %p108, %p109
      %p112 = scmp.ne.s32.totalorder %s97, %s111
      %p113 = scmp.eq.s32.totalorder %s24, 0
      %p114 = por %p112, %p113
      %s116 = sadd.s32 %s115, 1
      %p119 = scmp.eq.s32.totalorder %s18, 1
      %p120 = scmp.ne.s32.totalorder %s115, %s117
      %p121 = scmp.eq.s32.totalorder %s18, 0
      %p122 = por %p120, %p121
      %p123 = scmp.ne.s32.totalorder %s115, %s117
      %p124 = scmp.eq.s32.totalorder %s23, 1
      %p125 = por %p123, %p124
      %p126 = scmp.ne.s32.totalorder %s117, %s118
      %p127 = scmp.eq.s32.totalorder %s23, 0
      %p128 = por %p126, %p127
      %p129 = scmp.ne.s32.totalorder %s117, %s118
      %p130 = scmp.eq.s32.totalorder %s24, 1
      %p131 = por %p129, %p130
      %p133 = scmp.ne.s32.totalorder %s118, %s132
      %p134 = scmp.eq.s32.totalorder %s24, 0
      %p135 = por %p133, %p134
      %s136 = ssub.s32 %s18, %s25
      %p137 = scmp.eq.s32.totalorder %s136, 0
      %s139 = sadd.s32 %s138, 1
      %s140 = scalar_select %p137, %s138, %s139
      %p143 = pneg %p137
      %p144 = scmp.eq.s32.totalorder %s18, 1
      %p145 = por %p143, %p144
      %p146 = scmp.ne.s32.totalorder %s138, %s141
      %p147 = scmp.eq.s32.totalorder %s18, 0
      %p148 = por %p146, %p147
      %p149 = scmp.ne.s32.totalorder %s138, %s141
      %p150 = scmp.eq.s32.totalorder %s23, 1
      %p151 = por %p149, %p150
      %p152 = scmp.ne.s32.totalorder %s141, %s142
      %p153 = scmp.eq.s32.totalorder %s23, 0
      %p154 = por %p152, %p153
      %p155 = scmp.ne.s32.totalorder %s141, %s142
      %p156 = scmp.eq.s32.totalorder %s24, 1
      %p157 = por %p155, %p156
      %p159 = scmp.ne.s32.totalorder %s142, %s158
      %p160 = scmp.eq.s32.totalorder %s24, 0
      %p161 = por %p159, %p160
      %p162 = scmp.le.s32.totalorder 1, %s18
      %p163 = scmp.lt.s32.totalorder %s18, 3
      %p164 = pnand %p162, %p163
      %p165 = pneg %p164
      // Predicated region
      $region9: #{tpu_custom_call.1} parent=5 // pred_check
        _
      $region10: #{tpu_custom_call.1} parent=5 // pred_check_branch
        %167 = sbr.rel (%p164) target = $region12
      $region11: #{tpu_custom_call.1} parent=5 // pred_region
        %s168 = ssub.s32 %s18, 1
        // Predicated region
        $region13: #{tpu_custom_call.1} parent=11 // pred_check
          %p169 = pneg %p65
        $region14: #{tpu_custom_call.1} parent=11 // pred_check_branch
          %171 = sbr.rel (%p169) target = $region16
        $region15: #{tpu_custom_call.1} parent=11 // pred_region
          %173 = vsyncadd [#allocation6], 0
          %s174 = sshll.u32 %s1, 4
          %s175 = int_to_ptr.hbm [resolvable:$true] %s174
          %s176 = sshll.u32 [#allocation5], 4
          %s177 = int_to_ptr.vmem [resolvable:$true] %s176
          %182 = dma.hbm_to_vmem [thread:$0]  %s175, 6144, %s177, [#allocation6], 128, 128, 8
        $region16: #{tpu_custom_call.1} parent=11 // pred_fallthru
          _
        // Predicated region
        $region17: #{tpu_custom_call.1} parent=11 // pred_check
          %p183 = pneg %p86
        $region18: #{tpu_custom_call.1} parent=11 // pred_check_branch
          %185 = sbr.rel (%p183) target = $region20
        $region19: #{tpu_custom_call.1} parent=11 // pred_region
          _
        $region20: #{tpu_custom_call.1} parent=11 // pred_fallthru
          _
        // Predicated region
        $region21: #{tpu_custom_call.1} parent=11 // pred_check
          %p186 = pneg %p107
        $region22: #{tpu_custom_call.1} parent=11 // pred_check_branch
          %188 = sbr.rel (%p186) target = $region24
        $region23: #{tpu_custom_call.1} parent=11 // pred_region
          %190 = vsyncadd [#allocation6], 0
          %s191 = sshll.u32 %s3, 4
          %s192 = int_to_ptr.hbm [resolvable:$true] %s191
          %s193 = sshll.u32 [#allocation7], 4
          %s194 = int_to_ptr.vmem [resolvable:$true] %s193
          %199 = dma.hbm_to_vmem [thread:$0]  %s192, 6144, %s194, [#allocation6], 128, 128, 8
        $region24: #{tpu_custom_call.1} parent=11 // pred_fallthru
          _
        // Predicated region
        $region25: #{tpu_custom_call.1} parent=11 // pred_check
          %p200 = pneg %p128
        $region26: #{tpu_custom_call.1} parent=11 // pred_check_branch
          %202 = sbr.rel (%p200) target = $region28
        $region27: #{tpu_custom_call.1} parent=11 // pred_region
          _
        $region28: #{tpu_custom_call.1} parent=11 // pred_fallthru
          _
      $region12: #{tpu_custom_call.1} parent=5 // pred_fallthru
        _
      %p203 = scmp.lt.s32.totalorder %s18, 2
      // Predicated region
      $region29: #{tpu_custom_call.1} parent=5 // pred_check
        %p204 = pneg %p203
      $region30: #{tpu_custom_call.1} parent=5 // pred_check_branch
        %206 = sbr.rel (%p204) target = $region32
      $region31: #{tpu_custom_call.1} parent=5 // pred_region
        // Predicated region
        $region33: #{tpu_custom_call.1} parent=31 // pred_check
          %p207 = pneg %p38
        $region34: #{tpu_custom_call.1} parent=31 // pred_check_branch
          %209 = sbr.rel (%p207) target = $region36
        $region35: #{tpu_custom_call.1} parent=31 // pred_region
          %s210 = sand.u32 %s28, 1
          %s211 = scalar_lea.sflag [#allocation3], %s210
          %s212 = sand.u32 %s28, 1
          %s213 = smul.addr %s212, 128
          %s214 = scalar_lea.vmem [#allocation2], %s213
          %s215 = smul.u32 8, %s18
          %217 = vsyncadd %s211, 0
          %s218 = smul.addr %s215, 2
          %s219 = smul.addr %s218, 8
          %s220 = scalar_lea.hbm %s0, %s219
          %s221 = sshll.u32 %s220, 4
          %s222 = int_to_ptr.hbm [resolvable:$true] %s221
          %s223 = sshll.u32 %s214, 4
          %s224 = int_to_ptr.vmem [resolvable:$true] %s223
          %229 = dma.hbm_to_vmem [thread:$0]  %s222, 2048, %s224, %s211, 128, 128, 8
        $region36: #{tpu_custom_call.1} parent=31 // pred_fallthru
          _
      $region32: #{tpu_custom_call.1} parent=5 // pred_fallthru
        _
      %p230 = scmp.le.s32.totalorder 1, %s18
      %p231 = scmp.lt.s32.totalorder %s18, 3
      %p232 = pnand %p230, %p231
      %p233 = pneg %p232
      // Predicated region
      $region37: #{tpu_custom_call.1} parent=5 // pred_check
        _
      $region38: #{tpu_custom_call.1} parent=5 // pred_check_branch
        %235 = sbr.rel (%p232) target = $region40
      $region39: #{tpu_custom_call.1} parent=5 // pred_region
        %s236 = ssub.s32 %s18, 1
        %s237 = sand.u32 %s31, 1
        %s238 = scalar_lea.sflag [#allocation3], %s237
        %s239 = sand.u32 %s31, 1
        %s240 = smul.addr %s239, 128
        %s241 = scalar_lea.vmem [#allocation2], %s240
        // Predicated region
        $region41: #{tpu_custom_call.1} parent=39 // pred_check
          %p242 = pneg %p44
        $region42: #{tpu_custom_call.1} parent=39 // pred_check_branch
          %244 = sbr.rel (%p242) target = $region44
        $region43: #{tpu_custom_call.1} parent=39 // pred_region
          %246 = dma.done %s238, 2048
        $region44: #{tpu_custom_call.1} parent=39 // pred_fallthru
          _
        // Predicated region
        $region45: #{tpu_custom_call.1} parent=39 // pred_check
          %p247 = pneg %p65
        $region46: #{tpu_custom_call.1} parent=39 // pred_check_branch
          %249 = sbr.rel (%p247) target = $region48
        $region47: #{tpu_custom_call.1} parent=39 // pred_region
          %251 = dma.done [#allocation6], 6144
        $region48: #{tpu_custom_call.1} parent=39 // pred_fallthru
          _
        // Predicated region
        $region49: #{tpu_custom_call.1} parent=39 // pred_check
          %p252 = pneg %p107
        $region50: #{tpu_custom_call.1} parent=39 // pred_check_branch
          %254 = sbr.rel (%p252) target = $region52
        $region51: #{tpu_custom_call.1} parent=39 // pred_region
          %256 = dma.done [#allocation6], 6144
        $region52: #{tpu_custom_call.1} parent=39 // pred_fallthru
          _
        %s257 = sand.u32 %s31, 1
        %s258 = scalar_lea.sflag [#allocation3], %s257
        %s259 = sand.u32 %s31, 1
        %s260 = smul.addr %s259, 128
        %s261 = scalar_lea.vmem [#allocation2], %s260
        %p262 = pneg %p44
        %p263 = pneg %p41
        %p264 = pneg %p65
        %p265 = pneg %p62
        %p266 = pneg %p86
        %p267 = pneg %p83
        %p268 = pneg %p107
        %p269 = pneg %p104
        %p270 = pneg %p128
        %p271 = pneg %p125
        %p272 = pneg %p154
        %p273 = pneg %p151
        %s274 = sand.u32 %s141, 1
        %s275 = scalar_lea.sflag [#allocation4], %s274
        %s276 = sand.u32 %s141, 1
        %s277 = smul.addr %s276, 128
        %s278 = scalar_lea.vmem [#allocation8], %s277
        %s279 = smul.u32 8, %s23
        %s280 = smul.u32 8, %s23
        %v281 = vld [vmem:[%s241] sm:$0xff]
        %v282 = vld [vmem:[%s241 + $0x8] sm:$0xff]
        %v283 = vld [vmem:[%s241 + $0x10] sm:$0xff]
        %v284 = vld [vmem:[%s241 + $0x18] sm:$0xff]
        %v285 = vld [vmem:[%s241 + $0x20] sm:$0xff]
        %v286 = vld [vmem:[%s241 + $0x28] sm:$0xff]
        %v287 = vld [vmem:[%s241 + $0x30] sm:$0xff]
        %v288 = vld [vmem:[%s241 + $0x38] sm:$0xff]
        %v289 = vld [vmem:[%s241 + $0x40] sm:$0xff]
        %v290 = vld [vmem:[%s241 + $0x48] sm:$0xff]
        %v291 = vld [vmem:[%s241 + $0x50] sm:$0xff]
        %v292 = vld [vmem:[%s241 + $0x58] sm:$0xff]
        %v293 = vld [vmem:[%s241 + $0x60] sm:$0xff]
        %v294 = vld [vmem:[%s241 + $0x68] sm:$0xff]
        %v295 = vld [vmem:[%s241 + $0x70] sm:$0xff]
        %v296 = vld [vmem:[%s241 + $0x78] sm:$0xff]
        %vm313 = vcmask 1040384
        %v314 = vrot.slane %v281, 7
        %v315 = vrot.slane %v282, 7
        %v316 = vsel %vm313, %v314, %v315
        %v317 = vrot.slane %v283, 7
        %v318 = vrot.slane %v284, 7
        %v319 = vsel %vm313, %v317, %v318
        %v320 = vrot.slane %v285, 7
        %v321 = vrot.slane %v286, 7
        %v322 = vsel %vm313, %v320, %v321
        %v323 = vrot.slane %v287, 7
        %v324 = vrot.slane %v288, 7
        %v325 = vsel %vm313, %v323, %v324
        %v326 = vrot.slane %v289, 7
        %v327 = vrot.slane %v290, 7
        %v328 = vsel %vm313, %v326, %v327
        %v329 = vrot.slane %v291, 7
        %v330 = vrot.slane %v292, 7
        %v331 = vsel %vm313, %v329, %v330
        %v332 = vrot.slane %v293, 7
        %v333 = vrot.slane %v294, 7
        %v334 = vsel %vm313, %v332, %v333
        %v335 = vrot.slane %v295, 7
        %v336 = vrot.slane %v296, 7
        %v337 = vsel %vm313, %v335, %v336
        %v362 = vsel %vm313, 0.0, %v314
        %v363 = vsel %vm313, 0.0, %v317
        %v364 = vsel %vm313, 0.0, %v320
        %v365 = vsel %vm313, 0.0, %v323
        %v366 = vsel %vm313, 0.0, %v326
        %v367 = vsel %vm313, 0.0, %v329
        %v368 = vsel %vm313, 0.0, %v332
        %v369 = vsel %vm313, 0.0, %v335
        %v370 = vsel %vm313, %v315, 0.0
        %v371 = vsel %vm313, %v318, 0.0
        %v372 = vsel %vm313, %v321, 0.0
        %v373 = vsel %vm313, %v324, 0.0
        %v374 = vsel %vm313, %v327, 0.0
        %v375 = vsel %vm313, %v330, 0.0
        %v376 = vsel %vm313, %v333, 0.0
        %v377 = vsel %vm313, %v336, 0.0
        %v378 = vld [vmem:[%s2] sm:$0x1]
        %v380 = vperm.slane %v378, 0
        %v382 = vld [vmem:[#allocation5] sm:$0xff]
        %v383 = vld [vmem:[#allocation5 + $0x8] sm:$0xff]
        %v384 = vld [vmem:[#allocation5 + $0x10] sm:$0xff]
        %v385 = vld [vmem:[#allocation5 + $0x18] sm:$0xff]
        %v386 = vld [vmem:[#allocation5 + $0x20] sm:$0xff]
        %v387 = vld [vmem:[#allocation5 + $0x28] sm:$0xff]
        %v388 = vld [vmem:[#allocation5 + $0x30] sm:$0xff]
        %v389 = vld [vmem:[#allocation5 + $0x38] sm:$0xff]
        %v390 = vld [vmem:[#allocation5 + $0x40] sm:$0xff]
        %v391 = vld [vmem:[#allocation5 + $0x48] sm:$0xff]
        %v392 = vld [vmem:[#allocation5 + $0x50] sm:$0xff]
        %v393 = vld [vmem:[#allocation5 + $0x58] sm:$0xff]
        %v394 = vld [vmem:[#allocation5 + $0x60] sm:$0xff]
        %v395 = vld [vmem:[#allocation5 + $0x68] sm:$0xff]
        %v396 = vld [vmem:[#allocation5 + $0x70] sm:$0xff]
        %v397 = vld [vmem:[#allocation5 + $0x78] sm:$0xff]
        %398 = vmatpush.msra.mxu0 %v397
        %399 = vmatpush.msra.mxu0 %v396
        %400 = vmatpush.msra.mxu0 %v395
        %401 = vmatpush.msra.mxu0 %v394
        %402 = vmatpush.msra.mxu0 %v393
        %403 = vmatpush.msra.mxu0 %v392
        %404 = vmatpush.msra.mxu0 %v391
        %405 = vmatpush.msra.mxu0 %v390
        %406 = vmatpush.msra.mxu0 %v389
        %407 = vmatpush.msra.mxu0 %v388
        %408 = vmatpush.msra.mxu0 %v387
        %409 = vmatpush.msra.mxu0 %v386
        %410 = vmatpush.msra.mxu0 %v385
        %411 = vmatpush.msra.mxu0 %v384
        %412 = vmatpush.msra.mxu0 %v383
        %413 = vmatpush.msra.mxu0 %v382
        %414 = vmatmul.f32.gmra.mxu0 %v362
        %v415 = vpop.f32.mrf.mxu0
        %v416 = vadd.f32 0.0, %v415
        %417 = vmatmul.f32.gmra.mxu0 %v316
        %v418 = vpop.f32.mrf.mxu0
        %v419 = vadd.f32 0.0, %v418
        %420 = vmatmul.f32.gmra.mxu0 %v363
        %v421 = vpop.f32.mrf.mxu0
        %v422 = vadd.f32 0.0, %v421
        %423 = vmatmul.f32.gmra.mxu0 %v319
        %v424 = vpop.f32.mrf.mxu0
        %v425 = vadd.f32 0.0, %v424
        %426 = vmatmul.f32.gmra.mxu0 %v364
        %v427 = vpop.f32.mrf.mxu0
        %v428 = vadd.f32 0.0, %v427
        %429 = vmatmul.f32.gmra.mxu0 %v322
        %v430 = vpop.f32.mrf.mxu0
        %v431 = vadd.f32 0.0, %v430
        %432 = vmatmul.f32.gmra.mxu0 %v365
        %v433 = vpop.f32.mrf.mxu0
        %v434 = vadd.f32 0.0, %v433
        %435 = vmatmul.f32.gmra.mxu0 %v325
        %v436 = vpop.f32.mrf.mxu0
        %v437 = vadd.f32 0.0, %v436
        %438 = vmatmul.f32.gmra.mxu0 %v366
        %v439 = vpop.f32.mrf.mxu0
        %v440 = vadd.f32 0.0, %v439
        %441 = vmatmul.f32.gmra.mxu0 %v328
        %v442 = vpop.f32.mrf.mxu0
        %v443 = vadd.f32 0.0, %v442
        %444 = vmatmul.f32.gmra.mxu0 %v367
        %v445 = vpop.f32.mrf.mxu0
        %v446 = vadd.f32 0.0, %v445
        %447 = vmatmul.f32.gmra.mxu0 %v331
        %v448 = vpop.f32.mrf.mxu0
        %v449 = vadd.f32 0.0, %v448
        %450 = vmatmul.f32.gmra.mxu0 %v368
        %v451 = vpop.f32.mrf.mxu0
        %v452 = vadd.f32 0.0, %v451
        %453 = vmatmul.f32.gmra.mxu0 %v334
        %v454 = vpop.f32.mrf.mxu0
        %v455 = vadd.f32 0.0, %v454
        %456 = vmatmul.f32.gmra.mxu0 %v369
        %v457 = vpop.f32.mrf.mxu0
        %v458 = vadd.f32 0.0, %v457
        %459 = vmatmul.f32.gmra.mxu0 %v337
        %v460 = vpop.f32.mrf.mxu0
        %v461 = vadd.f32 0.0, %v460
        %462 = vdwg.mxu0
        %v463 = vadd.f32 %v380, %v416
        %v464 = vadd.f32 %v380, %v419
        %v465 = vadd.f32 %v380, %v422
        %v466 = vadd.f32 %v380, %v425
        %v467 = vadd.f32 %v380, %v428
        %v468 = vadd.f32 %v380, %v431
        %v469 = vadd.f32 %v380, %v434
        %v470 = vadd.f32 %v380, %v437
        %v471 = vadd.f32 %v380, %v440
        %v472 = vadd.f32 %v380, %v443
        %v473 = vadd.f32 %v380, %v446
        %v474 = vadd.f32 %v380, %v449
        %v475 = vadd.f32 %v380, %v452
        %v476 = vadd.f32 %v380, %v455
        %v477 = vadd.f32 %v380, %v458
        %v478 = vadd.f32 %v380, %v461
        %vm495 = vcmask 1046528
        %v496 = vrot.slane %v362, 1
        %v497 = vrot.slane %v316, 1
        %v498 = vsel %vm495, %v496, %v497
        %v499 = vrot.slane %v370, 1
        %v500 = vsel %vm495, %v497, %v499
        %v501 = vrot.slane %v363, 1
        %v502 = vrot.slane %v319, 1
        %v503 = vsel %vm495, %v501, %v502
        %v504 = vrot.slane %v371, 1
        %v505 = vsel %vm495, %v502, %v504
        %v506 = vrot.slane %v364, 1
        %v507 = vrot.slane %v322, 1
        %v508 = vsel %vm495, %v506, %v507
        %v509 = vrot.slane %v372, 1
        %v510 = vsel %vm495, %v507, %v509
        %v511 = vrot.slane %v365, 1
        %v512 = vrot.slane %v325, 1
        %v513 = vsel %vm495, %v511, %v512
        %v514 = vrot.slane %v373, 1
        %v515 = vsel %vm495, %v512, %v514
        %v516 = vrot.slane %v366, 1
        %v517 = vrot.slane %v328, 1
        %v518 = vsel %vm495, %v516, %v517
        %v519 = vrot.slane %v374, 1
        %v520 = vsel %vm495, %v517, %v519
        %v521 = vrot.slane %v367, 1
        %v522 = vrot.slane %v331, 1
        %v523 = vsel %vm495, %v521, %v522
        %v524 = vrot.slane %v375, 1
        %v525 = vsel %vm495, %v522, %v524
        %v526 = vrot.slane %v368, 1
        %v527 = vrot.slane %v334, 1
        %v528 = vsel %vm495, %v526, %v527
        %v529 = vrot.slane %v376, 1
        %v530 = vsel %vm495, %v527, %v529
        %v531 = vrot.slane %v369, 1
        %v532 = vrot.slane %v337, 1
        %v533 = vsel %vm495, %v531, %v532
        %v534 = vrot.slane %v377, 1
        %v535 = vsel %vm495, %v532, %v534
        %s552 = scalar_lea.vmem [#allocation5], 128
        %v553 = vld [vmem:[%s552] sm:$0xff]
        %v554 = vld [vmem:[%s552 + $0x8] sm:$0xff]
        %v555 = vld [vmem:[%s552 + $0x10] sm:$0xff]
        %v556 = vld [vmem:[%s552 + $0x18] sm:$0xff]
        %v557 = vld [vmem:[%s552 + $0x20] sm:$0xff]
        %v558 = vld [vmem:[%s552 + $0x28] sm:$0xff]
        %v559 = vld [vmem:[%s552 + $0x30] sm:$0xff]
        %v560 = vld [vmem:[%s552 + $0x38] sm:$0xff]
        %v561 = vld [vmem:[%s552 + $0x40] sm:$0xff]
        %v562 = vld [vmem:[%s552 + $0x48] sm:$0xff]
        %v563 = vld [vmem:[%s552 + $0x50] sm:$0xff]
        %v564 = vld [vmem:[%s552 + $0x58] sm:$0xff]
        %v565 = vld [vmem:[%s552 + $0x60] sm:$0xff]
        %v566 = vld [vmem:[%s552 + $0x68] sm:$0xff]
        %v567 = vld [vmem:[%s552 + $0x70] sm:$0xff]
        %v568 = vld [vmem:[%s552 + $0x78] sm:$0xff]
        %569 = vmatpush.msra.mxu0 %v568
        %570 = vmatpush.msra.mxu0 %v567
        %571 = vmatpush.msra.mxu0 %v566
        %572 = vmatpush.msra.mxu0 %v565
        %573 = vmatpush.msra.mxu0 %v564
        %574 = vmatpush.msra.mxu0 %v563
        %575 = vmatpush.msra.mxu0 %v562
        %576 = vmatpush.msra.mxu0 %v561
        %577 = vmatpush.msra.mxu0 %v560
        %578 = vmatpush.msra.mxu0 %v559
        %579 = vmatpush.msra.mxu0 %v558
        %580 = vmatpush.msra.mxu0 %v557
        %581 = vmatpush.msra.mxu0 %v556
        %582 = vmatpush.msra.mxu0 %v555
        %583 = vmatpush.msra.mxu0 %v554
        %584 = vmatpush.msra.mxu0 %v553
        %585 = vmatmul.f32.gmra.mxu0 %v498
        %v586 = vpop.f32.mrf.mxu0
        %v587 = vadd.f32 0.0, %v586
        %588 = vmatmul.f32.gmra.mxu0 %v500
        %v589 = vpop.f32.mrf.mxu0
        %v590 = vadd.f32 0.0, %v589
        %591 = vmatmul.f32.gmra.mxu0 %v503
        %v592 = vpop.f32.mrf.mxu0
        %v593 = vadd.f32 0.0, %v592
        %594 = vmatmul.f32.gmra.mxu0 %v505
        %v595 = vpop.f32.mrf.mxu0
        %v596 = vadd.f32 0.0, %v595
        %597 = vmatmul.f32.gmra.mxu0 %v508
        %v598 = vpop.f32.mrf.mxu0
        %v599 = vadd.f32 0.0, %v598
        %600 = vmatmul.f32.gmra.mxu0 %v510
        %v601 = vpop.f32.mrf.mxu0
        %v602 = vadd.f32 0.0, %v601
        %603 = vmatmul.f32.gmra.mxu0 %v513
        %v604 = vpop.f32.mrf.mxu0
        %v605 = vadd.f32 0.0, %v604
        %606 = vmatmul.f32.gmra.mxu0 %v515
        %v607 = vpop.f32.mrf.mxu0
        %v608 = vadd.f32 0.0, %v607
        %609 = vmatmul.f32.gmra.mxu0 %v518
        %v610 = vpop.f32.mrf.mxu0
        %v611 = vadd.f32 0.0, %v610
        %612 = vmatmul.f32.gmra.mxu0 %v520
        %v613 = vpop.f32.mrf.mxu0
        %v614 = vadd.f32 0.0, %v613
        %615 = vmatmul.f32.gmra.mxu0 %v523
        %v616 = vpop.f32.mrf.mxu0
        %v617 = vadd.f32 0.0, %v616
        %618 = vmatmul.f32.gmra.mxu0 %v525
        %v619 = vpop.f32.mrf.mxu0
        %v620 = vadd.f32 0.0, %v619
        %621 = vmatmul.f32.gmra.mxu0 %v528
        %v622 = vpop.f32.mrf.mxu0
        %v623 = vadd.f32 0.0, %v622
        %624 = vmatmul.f32.gmra.mxu0 %v530
        %v625 = vpop.f32.mrf.mxu0
        %v626 = vadd.f32 0.0, %v625
        %627 = vmatmul.f32.gmra.mxu0 %v533
        %v628 = vpop.f32.mrf.mxu0
        %v629 = vadd.f32 0.0, %v628
        %630 = vmatmul.f32.gmra.mxu0 %v535
        %v631 = vpop.f32.mrf.mxu0
        %v632 = vadd.f32 0.0, %v631
        %633 = vdwg.mxu0
        %v634 = vadd.f32 %v463, %v587
        %v635 = vadd.f32 %v464, %v590
        %v636 = vadd.f32 %v465, %v593
        %v637 = vadd.f32 %v466, %v596
        %v638 = vadd.f32 %v467, %v599
        %v639 = vadd.f32 %v468, %v602
        %v640 = vadd.f32 %v469, %v605
        %v641 = vadd.f32 %v470, %v608
        %v642 = vadd.f32 %v471, %v611
        %v643 = vadd.f32 %v472, %v614
        %v644 = vadd.f32 %v473, %v617
        %v645 = vadd.f32 %v474, %v620
        %v646 = vadd.f32 %v475, %v623
        %v647 = vadd.f32 %v476, %v626
        %v648 = vadd.f32 %v477, %v629
        %v649 = vadd.f32 %v478, %v632
        %vm650 = vcmask 1045504
        %v651 = vrot.slane %v362, 2
        %v652 = vrot.slane %v316, 2
        %v653 = vsel %vm650, %v651, %v652
        %v654 = vrot.slane %v370, 2
        %v655 = vsel %vm650, %v652, %v654
        %v656 = vrot.slane %v363, 2
        %v657 = vrot.slane %v319, 2
        %v658 = vsel %vm650, %v656, %v657
        %v659 = vrot.slane %v371, 2
        %v660 = vsel %vm650, %v657, %v659
        %v661 = vrot.slane %v364, 2
        %v662 = vrot.slane %v322, 2
        %v663 = vsel %vm650, %v661, %v662
        %v664 = vrot.slane %v372, 2
        %v665 = vsel %vm650, %v662, %v664
        %v666 = vrot.slane %v365, 2
        %v667 = vrot.slane %v325, 2
        %v668 = vsel %vm650, %v666, %v667
        %v669 = vrot.slane %v373, 2
        %v670 = vsel %vm650, %v667, %v669
        %v671 = vrot.slane %v366, 2
        %v672 = vrot.slane %v328, 2
        %v673 = vsel %vm650, %v671, %v672
        %v674 = vrot.slane %v374, 2
        %v675 = vsel %vm650, %v672, %v674
        %v676 = vrot.slane %v367, 2
        %v677 = vrot.slane %v331, 2
        %v678 = vsel %vm650, %v676, %v677
        %v679 = vrot.slane %v375, 2
        %v680 = vsel %vm650, %v677, %v679
        %v681 = vrot.slane %v368, 2
        %v682 = vrot.slane %v334, 2
        %v683 = vsel %vm650, %v681, %v682
        %v684 = vrot.slane %v376, 2
        %v685 = vsel %vm650, %v682, %v684
        %v686 = vrot.slane %v369, 2
        %v687 = vrot.slane %v337, 2
        %v688 = vsel %vm650, %v686, %v687
        %v689 = vrot.slane %v377, 2
        %v690 = vsel %vm650, %v687, %v689
        %s707 = scalar_lea.vmem [#allocation5], 256
        %v708 = vld [vmem:[%s707] sm:$0xff]
        %v709 = vld [vmem:[%s707 + $0x8] sm:$0xff]
        %v710 = vld [vmem:[%s707 + $0x10] sm:$0xff]
        %v711 = vld [vmem:[%s707 + $0x18] sm:$0xff]
        %v712 = vld [vmem:[%s707 + $0x20] sm:$0xff]
        %v713 = vld [vmem:[%s707 + $0x28] sm:$0xff]
        %v714 = vld [vmem:[%s707 + $0x30] sm:$0xff]
        %v715 = vld [vmem:[%s707 + $0x38] sm:$0xff]
        %v716 = vld [vmem:[%s707 + $0x40] sm:$0xff]
        %v717 = vld [vmem:[%s707 + $0x48] sm:$0xff]
        %v718 = vld [vmem:[%s707 + $0x50] sm:$0xff]
        %v719 = vld [vmem:[%s707 + $0x58] sm:$0xff]
        %v720 = vld [vmem:[%s707 + $0x60] sm:$0xff]
        %v721 = vld [vmem:[%s707 + $0x68] sm:$0xff]
        %v722 = vld [vmem:[%s707 + $0x70] sm:$0xff]
        %v723 = vld [vmem:[%s707 + $0x78] sm:$0xff]
        %724 = vmatpush.msra.mxu0 %v723
        %725 = vmatpush.msra.mxu0 %v722
        %726 = vmatpush.msra.mxu0 %v721
        %727 = vmatpush.msra.mxu0 %v720
        %728 = vmatpush.msra.mxu0 %v719
        %729 = vmatpush.msra.mxu0 %v718
        %730 = vmatpush.msra.mxu0 %v717
        %731 = vmatpush.msra.mxu0 %v716
        %732 = vmatpush.msra.mxu0 %v715
        %733 = vmatpush.msra.mxu0 %v714
        %734 = vmatpush.msra.mxu0 %v713
        %735 = vmatpush.msra.mxu0 %v712
        %736 = vmatpush.msra.mxu0 %v711
        %737 = vmatpush.msra.mxu0 %v710
        %738 = vmatpush.msra.mxu0 %v709
        %739 = vmatpush.msra.mxu0 %v708
        %740 = vmatmul.f32.gmra.mxu0 %v653
        %v741 = vpop.f32.mrf.mxu0
        %v742 = vadd.f32 0.0, %v741
        %743 = vmatmul.f32.gmra.mxu0 %v655
        %v744 = vpop.f32.mrf.mxu0
        %v745 = vadd.f32 0.0, %v744
        %746 = vmatmul.f32.gmra.mxu0 %v658
        %v747 = vpop.f32.mrf.mxu0
        %v748 = vadd.f32 0.0, %v747
        %749 = vmatmul.f32.gmra.mxu0 %v660
        %v750 = vpop.f32.mrf.mxu0
        %v751 = vadd.f32 0.0, %v750
        %752 = vmatmul.f32.gmra.mxu0 %v663
        %v753 = vpop.f32.mrf.mxu0
        %v754 = vadd.f32 0.0, %v753
        %755 = vmatmul.f32.gmra.mxu0 %v665
        %v756 = vpop.f32.mrf.mxu0
        %v757 = vadd.f32 0.0, %v756
        %758 = vmatmul.f32.gmra.mxu0 %v668
        %v759 = vpop.f32.mrf.mxu0
        %v760 = vadd.f32 0.0, %v759
        %761 = vmatmul.f32.gmra.mxu0 %v670
        %v762 = vpop.f32.mrf.mxu0
        %v763 = vadd.f32 0.0, %v762
        %764 = vmatmul.f32.gmra.mxu0 %v673
        %v765 = vpop.f32.mrf.mxu0
        %v766 = vadd.f32 0.0, %v765
        %767 = vmatmul.f32.gmra.mxu0 %v675
        %v768 = vpop.f32.mrf.mxu0
        %v769 = vadd.f32 0.0, %v768
        %770 = vmatmul.f32.gmra.mxu0 %v678
        %v771 = vpop.f32.mrf.mxu0
        %v772 = vadd.f32 0.0, %v771
        %773 = vmatmul.f32.gmra.mxu0 %v680
        %v774 = vpop.f32.mrf.mxu0
        %v775 = vadd.f32 0.0, %v774
        %776 = vmatmul.f32.gmra.mxu0 %v683
        %v777 = vpop.f32.mrf.mxu0
        %v778 = vadd.f32 0.0, %v777
        %779 = vmatmul.f32.gmra.mxu0 %v685
        %v780 = vpop.f32.mrf.mxu0
        %v781 = vadd.f32 0.0, %v780
        %782 = vmatmul.f32.gmra.mxu0 %v688
        %v783 = vpop.f32.mrf.mxu0
        %v784 = vadd.f32 0.0, %v783
        %785 = vmatmul.f32.gmra.mxu0 %v690
        %v786 = vpop.f32.mrf.mxu0
        %v787 = vadd.f32 0.0, %v786
        %788 = vdwg.mxu0
        %v789 = vadd.f32 %v634, %v742
        %v790 = vadd.f32 %v635, %v745
        %v791 = vadd.f32 %v636, %v748
        %v792 = vadd.f32 %v637, %v751
        %v793 = vadd.f32 %v638, %v754
        %v794 = vadd.f32 %v639, %v757
        %v795 = vadd.f32 %v640, %v760
        %v796 = vadd.f32 %v641, %v763
        %v797 = vadd.f32 %v642, %v766
        %v798 = vadd.f32 %v643, %v769
        %v799 = vadd.f32 %v644, %v772
        %v800 = vadd.f32 %v645, %v775
        %v801 = vadd.f32 %v646, %v778
        %v802 = vadd.f32 %v647, %v781
        %v803 = vadd.f32 %v648, %v784
        %v804 = vadd.f32 %v649, %v787
        %v805 = vmax.f32 %v789, 0.0
        %v806 = vmax.f32 %v790, 0.0
        %v807 = vmax.f32 %v791, 0.0
        %v808 = vmax.f32 %v792, 0.0
        %v809 = vmax.f32 %v793, 0.0
        %v810 = vmax.f32 %v794, 0.0
        %v811 = vmax.f32 %v795, 0.0
        %v812 = vmax.f32 %v796, 0.0
        %v813 = vmax.f32 %v797, 0.0
        %v814 = vmax.f32 %v798, 0.0
        %v815 = vmax.f32 %v799, 0.0
        %v816 = vmax.f32 %v800, 0.0
        %v817 = vmax.f32 %v801, 0.0
        %v818 = vmax.f32 %v802, 0.0
        %v819 = vmax.f32 %v803, 0.0
        %v820 = vmax.f32 %v804, 0.0
        %v837 = vrot.slane %v805, 7
        %v838 = vrot.slane %v806, 7
        %v839 = vsel %vm313, %v837, %v838
        %v840 = vrot.slane %v807, 7
        %v841 = vrot.slane %v808, 7
        %v842 = vsel %vm313, %v840, %v841
        %v843 = vrot.slane %v809, 7
        %v844 = vrot.slane %v810, 7
        %v845 = vsel %vm313, %v843, %v844
        %v846 = vrot.slane %v811, 7
        %v847 = vrot.slane %v812, 7
        %v848 = vsel %vm313, %v846, %v847
        %v849 = vrot.slane %v813, 7
        %v850 = vrot.slane %v814, 7
        %v851 = vsel %vm313, %v849, %v850
        %v852 = vrot.slane %v815, 7
        %v853 = vrot.slane %v816, 7
        %v854 = vsel %vm313, %v852, %v853
        %v855 = vrot.slane %v817, 7
        %v856 = vrot.slane %v818, 7
        %v857 = vsel %vm313, %v855, %v856
        %v858 = vrot.slane %v819, 7
        %v859 = vrot.slane %v820, 7
        %v860 = vsel %vm313, %v858, %v859
        %v885 = vsel %vm313, 0.0, %v837
        %v886 = vsel %vm313, 0.0, %v840
        %v887 = vsel %vm313, 0.0, %v843
        %v888 = vsel %vm313, 0.0, %v846
        %v889 = vsel %vm313, 0.0, %v849
        %v890 = vsel %vm313, 0.0, %v852
        %v891 = vsel %vm313, 0.0, %v855
        %v892 = vsel %vm313, 0.0, %v858
        %v893 = vsel %vm313, %v838, 0.0
        %v894 = vsel %vm313, %v841, 0.0
        %v895 = vsel %vm313, %v844, 0.0
        %v896 = vsel %vm313, %v847, 0.0
        %v897 = vsel %vm313, %v850, 0.0
        %v898 = vsel %vm313, %v853, 0.0
        %v899 = vsel %vm313, %v856, 0.0
        %v900 = vsel %vm313, %v859, 0.0
        %v901 = vld [vmem:[%s4] sm:$0x1]
        %v903 = vperm.slane %v901, 0
        %v905 = vld [vmem:[#allocation7] sm:$0xff]
        %v906 = vld [vmem:[#allocation7 + $0x8] sm:$0xff]
        %v907 = vld [vmem:[#allocation7 + $0x10] sm:$0xff]
        %v908 = vld [vmem:[#allocation7 + $0x18] sm:$0xff]
        %v909 = vld [vmem:[#allocation7 + $0x20] sm:$0xff]
        %v910 = vld [vmem:[#allocation7 + $0x28] sm:$0xff]
        %v911 = vld [vmem:[#allocation7 + $0x30] sm:$0xff]
        %v912 = vld [vmem:[#allocation7 + $0x38] sm:$0xff]
        %v913 = vld [vmem:[#allocation7 + $0x40] sm:$0xff]
        %v914 = vld [vmem:[#allocation7 + $0x48] sm:$0xff]
        %v915 = vld [vmem:[#allocation7 + $0x50] sm:$0xff]
        %v916 = vld [vmem:[#allocation7 + $0x58] sm:$0xff]
        %v917 = vld [vmem:[#allocation7 + $0x60] sm:$0xff]
        %v918 = vld [vmem:[#allocation7 + $0x68] sm:$0xff]
        %v919 = vld [vmem:[#allocation7 + $0x70] sm:$0xff]
        %v920 = vld [vmem:[#allocation7 + $0x78] sm:$0xff]
        %921 = vmatpush.msra.mxu0 %v920
        %922 = vmatpush.msra.mxu0 %v919
        %923 = vmatpush.msra.mxu0 %v918
        %924 = vmatpush.msra.mxu0 %v917
        %925 = vmatpush.msra.mxu0 %v916
        %926 = vmatpush.msra.mxu0 %v915
        %927 = vmatpush.msra.mxu0 %v914
        %928 = vmatpush.msra.mxu0 %v913
        %929 = vmatpush.msra.mxu0 %v912
        %930 = vmatpush.msra.mxu0 %v911
        %931 = vmatpush.msra.mxu0 %v910
        %932 = vmatpush.msra.mxu0 %v909
        %933 = vmatpush.msra.mxu0 %v908
        %934 = vmatpush.msra.mxu0 %v907
        %935 = vmatpush.msra.mxu0 %v906
        %936 = vmatpush.msra.mxu0 %v905
        %937 = vmatmul.f32.gmra.mxu0 %v885
        %v938 = vpop.f32.mrf.mxu0
        %v939 = vadd.f32 0.0, %v938
        %940 = vmatmul.f32.gmra.mxu0 %v839
        %v941 = vpop.f32.mrf.mxu0
        %v942 = vadd.f32 0.0, %v941
        %943 = vmatmul.f32.gmra.mxu0 %v886
        %v944 = vpop.f32.mrf.mxu0
        %v945 = vadd.f32 0.0, %v944
        %946 = vmatmul.f32.gmra.mxu0 %v842
        %v947 = vpop.f32.mrf.mxu0
        %v948 = vadd.f32 0.0, %v947
        %949 = vmatmul.f32.gmra.mxu0 %v887
        %v950 = vpop.f32.mrf.mxu0
        %v951 = vadd.f32 0.0, %v950
        %952 = vmatmul.f32.gmra.mxu0 %v845
        %v953 = vpop.f32.mrf.mxu0
        %v954 = vadd.f32 0.0, %v953
        %955 = vmatmul.f32.gmra.mxu0 %v888
        %v956 = vpop.f32.mrf.mxu0
        %v957 = vadd.f32 0.0, %v956
        %958 = vmatmul.f32.gmra.mxu0 %v848
        %v959 = vpop.f32.mrf.mxu0
        %v960 = vadd.f32 0.0, %v959
        %961 = vmatmul.f32.gmra.mxu0 %v889
        %v962 = vpop.f32.mrf.mxu0
        %v963 = vadd.f32 0.0, %v962
        %964 = vmatmul.f32.gmra.mxu0 %v851
        %v965 = vpop.f32.mrf.mxu0
        %v966 = vadd.f32 0.0, %v965
        %967 = vmatmul.f32.gmra.mxu0 %v890
        %v968 = vpop.f32.mrf.mxu0
        %v969 = vadd.f32 0.0, %v968
        %970 = vmatmul.f32.gmra.mxu0 %v854
        %v971 = vpop.f32.mrf.mxu0
        %v972 = vadd.f32 0.0, %v971
        %973 = vmatmul.f32.gmra.mxu0 %v891
        %v974 = vpop.f32.mrf.mxu0
        %v975 = vadd.f32 0.0, %v974
        %976 = vmatmul.f32.gmra.mxu0 %v857
        %v977 = vpop.f32.mrf.mxu0
        %v978 = vadd.f32 0.0, %v977
        %979 = vmatmul.f32.gmra.mxu0 %v892
        %v980 = vpop.f32.mrf.mxu0
        %v981 = vadd.f32 0.0, %v980
        %982 = vmatmul.f32.gmra.mxu0 %v860
        %v983 = vpop.f32.mrf.mxu0
        %v984 = vadd.f32 0.0, %v983
        %985 = vdwg.mxu0
        %v986 = vadd.f32 %v903, %v939
        %v987 = vadd.f32 %v903, %v942
        %v988 = vadd.f32 %v903, %v945
        %v989 = vadd.f32 %v903, %v948
        %v990 = vadd.f32 %v903, %v951
        %v991 = vadd.f32 %v903, %v954
        %v992 = vadd.f32 %v903, %v957
        %v993 = vadd.f32 %v903, %v960
        %v994 = vadd.f32 %v903, %v963
        %v995 = vadd.f32 %v903, %v966
        %v996 = vadd.f32 %v903, %v969
        %v997 = vadd.f32 %v903, %v972
        %v998 = vadd.f32 %v903, %v975
        %v999 = vadd.f32 %v903, %v978
        %v1000 = vadd.f32 %v903, %v981
        %v1001 = vadd.f32 %v903, %v984
        %v1018 = vrot.slane %v885, 1
        %v1019 = vrot.slane %v839, 1
        %v1020 = vsel %vm495, %v1018, %v1019
        %v1021 = vrot.slane %v893, 1
        %v1022 = vsel %vm495, %v1019, %v1021
        %v1023 = vrot.slane %v886, 1
        %v1024 = vrot.slane %v842, 1
        %v1025 = vsel %vm495, %v1023, %v1024
        %v1026 = vrot.slane %v894, 1
        %v1027 = vsel %vm495, %v1024, %v1026
        %v1028 = vrot.slane %v887, 1
        %v1029 = vrot.slane %v845, 1
        %v1030 = vsel %vm495, %v1028, %v1029
        %v1031 = vrot.slane %v895, 1
        %v1032 = vsel %vm495, %v1029, %v1031
        %v1033 = vrot.slane %v888, 1
        %v1034 = vrot.slane %v848, 1
        %v1035 = vsel %vm495, %v1033, %v1034
        %v1036 = vrot.slane %v896, 1
        %v1037 = vsel %vm495, %v1034, %v1036
        %v1038 = vrot.slane %v889, 1
        %v1039 = vrot.slane %v851, 1
        %v1040 = vsel %vm495, %v1038, %v1039
        %v1041 = vrot.slane %v897, 1
        %v1042 = vsel %vm495, %v1039, %v1041
        %v1043 = vrot.slane %v890, 1
        %v1044 = vrot.slane %v854, 1
        %v1045 = vsel %vm495, %v1043, %v1044
        %v1046 = vrot.slane %v898, 1
        %v1047 = vsel %vm495, %v1044, %v1046
        %v1048 = vrot.slane %v891, 1
        %v1049 = vrot.slane %v857, 1
        %v1050 = vsel %vm495, %v1048, %v1049
        %v1051 = vrot.slane %v899, 1
        %v1052 = vsel %vm495, %v1049, %v1051
        %v1053 = vrot.slane %v892, 1
        %v1054 = vrot.slane %v860, 1
        %v1055 = vsel %vm495, %v1053, %v1054
        %v1056 = vrot.slane %v900, 1
        %v1057 = vsel %vm495, %v1054, %v1056
        %s1074 = scalar_lea.vmem [#allocation7], 128
        %v1075 = vld [vmem:[%s1074] sm:$0xff]
        %v1076 = vld [vmem:[%s1074 + $0x8] sm:$0xff]
        %v1077 = vld [vmem:[%s1074 + $0x10] sm:$0xff]
        %v1078 = vld [vmem:[%s1074 + $0x18] sm:$0xff]
        %v1079 = vld [vmem:[%s1074 + $0x20] sm:$0xff]
        %v1080 = vld [vmem:[%s1074 + $0x28] sm:$0xff]
        %v1081 = vld [vmem:[%s1074 + $0x30] sm:$0xff]
        %v1082 = vld [vmem:[%s1074 + $0x38] sm:$0xff]
        %v1083 = vld [vmem:[%s1074 + $0x40] sm:$0xff]
        %v1084 = vld [vmem:[%s1074 + $0x48] sm:$0xff]
        %v1085 = vld [vmem:[%s1074 + $0x50] sm:$0xff]
        %v1086 = vld [vmem:[%s1074 + $0x58] sm:$0xff]
        %v1087 = vld [vmem:[%s1074 + $0x60] sm:$0xff]
        %v1088 = vld [vmem:[%s1074 + $0x68] sm:$0xff]
        %v1089 = vld [vmem:[%s1074 + $0x70] sm:$0xff]
        %v1090 = vld [vmem:[%s1074 + $0x78] sm:$0xff]
        %1091 = vmatpush.msra.mxu0 %v1090
        %1092 = vmatpush.msra.mxu0 %v1089
        %1093 = vmatpush.msra.mxu0 %v1088
        %1094 = vmatpush.msra.mxu0 %v1087
        %1095 = vmatpush.msra.mxu0 %v1086
        %1096 = vmatpush.msra.mxu0 %v1085
        %1097 = vmatpush.msra.mxu0 %v1084
        %1098 = vmatpush.msra.mxu0 %v1083
        %1099 = vmatpush.msra.mxu0 %v1082
        %1100 = vmatpush.msra.mxu0 %v1081
        %1101 = vmatpush.msra.mxu0 %v1080
        %1102 = vmatpush.msra.mxu0 %v1079
        %1103 = vmatpush.msra.mxu0 %v1078
        %1104 = vmatpush.msra.mxu0 %v1077
        %1105 = vmatpush.msra.mxu0 %v1076
        %1106 = vmatpush.msra.mxu0 %v1075
        %1107 = vmatmul.f32.gmra.mxu0 %v1020
        %v1108 = vpop.f32.mrf.mxu0
        %v1109 = vadd.f32 0.0, %v1108
        %1110 = vmatmul.f32.gmra.mxu0 %v1022
        %v1111 = vpop.f32.mrf.mxu0
        %v1112 = vadd.f32 0.0, %v1111
        %1113 = vmatmul.f32.gmra.mxu0 %v1025
        %v1114 = vpop.f32.mrf.mxu0
        %v1115 = vadd.f32 0.0, %v1114
        %1116 = vmatmul.f32.gmra.mxu0 %v1027
        %v1117 = vpop.f32.mrf.mxu0
        %v1118 = vadd.f32 0.0, %v1117
        %1119 = vmatmul.f32.gmra.mxu0 %v1030
        %v1120 = vpop.f32.mrf.mxu0
        %v1121 = vadd.f32 0.0, %v1120
        %1122 = vmatmul.f32.gmra.mxu0 %v1032
        %v1123 = vpop.f32.mrf.mxu0
        %v1124 = vadd.f32 0.0, %v1123
        %1125 = vmatmul.f32.gmra.mxu0 %v1035
        %v1126 = vpop.f32.mrf.mxu0
        %v1127 = vadd.f32 0.0, %v1126
        %1128 = vmatmul.f32.gmra.mxu0 %v1037
        %v1129 = vpop.f32.mrf.mxu0
        %v1130 = vadd.f32 0.0, %v1129
        %1131 = vmatmul.f32.gmra.mxu0 %v1040
        %v1132 = vpop.f32.mrf.mxu0
        %v1133 = vadd.f32 0.0, %v1132
        %1134 = vmatmul.f32.gmra.mxu0 %v1042
        %v1135 = vpop.f32.mrf.mxu0
        %v1136 = vadd.f32 0.0, %v1135
        %1137 = vmatmul.f32.gmra.mxu0 %v1045
        %v1138 = vpop.f32.mrf.mxu0
        %v1139 = vadd.f32 0.0, %v1138
        %1140 = vmatmul.f32.gmra.mxu0 %v1047
        %v1141 = vpop.f32.mrf.mxu0
        %v1142 = vadd.f32 0.0, %v1141
        %1143 = vmatmul.f32.gmra.mxu0 %v1050
        %v1144 = vpop.f32.mrf.mxu0
        %v1145 = vadd.f32 0.0, %v1144
        %1146 = vmatmul.f32.gmra.mxu0 %v1052
        %v1147 = vpop.f32.mrf.mxu0
        %v1148 = vadd.f32 0.0, %v1147
        %1149 = vmatmul.f32.gmra.mxu0 %v1055
        %v1150 = vpop.f32.mrf.mxu0
        %v1151 = vadd.f32 0.0, %v1150
        %1152 = vmatmul.f32.gmra.mxu0 %v1057
        %v1153 = vpop.f32.mrf.mxu0
        %v1154 = vadd.f32 0.0, %v1153
        %1155 = vdwg.mxu0
        %v1156 = vadd.f32 %v986, %v1109
        %v1157 = vadd.f32 %v987, %v1112
        %v1158 = vadd.f32 %v988, %v1115
        %v1159 = vadd.f32 %v989, %v1118
        %v1160 = vadd.f32 %v990, %v1121
        %v1161 = vadd.f32 %v991, %v1124
        %v1162 = vadd.f32 %v992, %v1127
        %v1163 = vadd.f32 %v993, %v1130
        %v1164 = vadd.f32 %v994, %v1133
        %v1165 = vadd.f32 %v995, %v1136
        %v1166 = vadd.f32 %v996, %v1139
        %v1167 = vadd.f32 %v997, %v1142
        %v1168 = vadd.f32 %v998, %v1145
        %v1169 = vadd.f32 %v999, %v1148
        %v1170 = vadd.f32 %v1000, %v1151
        %v1171 = vadd.f32 %v1001, %v1154
        %v1172 = vrot.slane %v885, 2
        %v1173 = vrot.slane %v839, 2
        %v1174 = vsel %vm650, %v1172, %v1173
        %v1175 = vrot.slane %v893, 2
        %v1176 = vsel %vm650, %v1173, %v1175
        %v1177 = vrot.slane %v886, 2
        %v1178 = vrot.slane %v842, 2
        %v1179 = vsel %vm650, %v1177, %v1178
        %v1180 = vrot.slane %v894, 2
        %v1181 = vsel %vm650, %v1178, %v1180
        %v1182 = vrot.slane %v887, 2
        %v1183 = vrot.slane %v845, 2
        %v1184 = vsel %vm650, %v1182, %v1183
        %v1185 = vrot.slane %v895, 2
        %v1186 = vsel %vm650, %v1183, %v1185
        %v1187 = vrot.slane %v888, 2
        %v1188 = vrot.slane %v848, 2
        %v1189 = vsel %vm650, %v1187, %v1188
        %v1190 = vrot.slane %v896, 2
        %v1191 = vsel %vm650, %v1188, %v1190
        %v1192 = vrot.slane %v889, 2
        %v1193 = vrot.slane %v851, 2
        %v1194 = vsel %vm650, %v1192, %v1193
        %v1195 = vrot.slane %v897, 2
        %v1196 = vsel %vm650, %v1193, %v1195
        %v1197 = vrot.slane %v890, 2
        %v1198 = vrot.slane %v854, 2
        %v1199 = vsel %vm650, %v1197, %v1198
        %v1200 = vrot.slane %v898, 2
        %v1201 = vsel %vm650, %v1198, %v1200
        %v1202 = vrot.slane %v891, 2
        %v1203 = vrot.slane %v857, 2
        %v1204 = vsel %vm650, %v1202, %v1203
        %v1205 = vrot.slane %v899, 2
        %v1206 = vsel %vm650, %v1203, %v1205
        %v1207 = vrot.slane %v892, 2
        %v1208 = vrot.slane %v860, 2
        %v1209 = vsel %vm650, %v1207, %v1208
        %v1210 = vrot.slane %v900, 2
        %v1211 = vsel %vm650, %v1208, %v1210
        %s1228 = scalar_lea.vmem [#allocation7], 256
        %v1229 = vld [vmem:[%s1228] sm:$0xff]
        %v1230 = vld [vmem:[%s1228 + $0x8] sm:$0xff]
        %v1231 = vld [vmem:[%s1228 + $0x10] sm:$0xff]
        %v1232 = vld [vmem:[%s1228 + $0x18] sm:$0xff]
        %v1233 = vld [vmem:[%s1228 + $0x20] sm:$0xff]
        %v1234 = vld [vmem:[%s1228 + $0x28] sm:$0xff]
        %v1235 = vld [vmem:[%s1228 + $0x30] sm:$0xff]
        %v1236 = vld [vmem:[%s1228 + $0x38] sm:$0xff]
        %v1237 = vld [vmem:[%s1228 + $0x40] sm:$0xff]
        %v1238 = vld [vmem:[%s1228 + $0x48] sm:$0xff]
        %v1239 = vld [vmem:[%s1228 + $0x50] sm:$0xff]
        %v1240 = vld [vmem:[%s1228 + $0x58] sm:$0xff]
        %v1241 = vld [vmem:[%s1228 + $0x60] sm:$0xff]
        %v1242 = vld [vmem:[%s1228 + $0x68] sm:$0xff]
        %v1243 = vld [vmem:[%s1228 + $0x70] sm:$0xff]
        %v1244 = vld [vmem:[%s1228 + $0x78] sm:$0xff]
        %1245 = vmatpush.msra.mxu0 %v1244
        %1246 = vmatpush.msra.mxu0 %v1243
        %1247 = vmatpush.msra.mxu0 %v1242
        %1248 = vmatpush.msra.mxu0 %v1241
        %1249 = vmatpush.msra.mxu0 %v1240
        %1250 = vmatpush.msra.mxu0 %v1239
        %1251 = vmatpush.msra.mxu0 %v1238
        %1252 = vmatpush.msra.mxu0 %v1237
        %1253 = vmatpush.msra.mxu0 %v1236
        %1254 = vmatpush.msra.mxu0 %v1235
        %1255 = vmatpush.msra.mxu0 %v1234
        %1256 = vmatpush.msra.mxu0 %v1233
        %1257 = vmatpush.msra.mxu0 %v1232
        %1258 = vmatpush.msra.mxu0 %v1231
        %1259 = vmatpush.msra.mxu0 %v1230
        %1260 = vmatpush.msra.mxu0 %v1229
        %1261 = vmatmul.f32.gmra.mxu0 %v1174
        %v1262 = vpop.f32.mrf.mxu0
        %v1263 = vadd.f32 0.0, %v1262
        %1264 = vmatmul.f32.gmra.mxu0 %v1176
        %v1265 = vpop.f32.mrf.mxu0
        %v1266 = vadd.f32 0.0, %v1265
        %1267 = vmatmul.f32.gmra.mxu0 %v1179
        %v1268 = vpop.f32.mrf.mxu0
        %v1269 = vadd.f32 0.0, %v1268
        %1270 = vmatmul.f32.gmra.mxu0 %v1181
        %v1271 = vpop.f32.mrf.mxu0
        %v1272 = vadd.f32 0.0, %v1271
        %1273 = vmatmul.f32.gmra.mxu0 %v1184
        %v1274 = vpop.f32.mrf.mxu0
        %v1275 = vadd.f32 0.0, %v1274
        %1276 = vmatmul.f32.gmra.mxu0 %v1186
        %v1277 = vpop.f32.mrf.mxu0
        %v1278 = vadd.f32 0.0, %v1277
        %1279 = vmatmul.f32.gmra.mxu0 %v1189
        %v1280 = vpop.f32.mrf.mxu0
        %v1281 = vadd.f32 0.0, %v1280
        %1282 = vmatmul.f32.gmra.mxu0 %v1191
        %v1283 = vpop.f32.mrf.mxu0
        %v1284 = vadd.f32 0.0, %v1283
        %1285 = vmatmul.f32.gmra.mxu0 %v1194
        %v1286 = vpop.f32.mrf.mxu0
        %v1287 = vadd.f32 0.0, %v1286
        %1288 = vmatmul.f32.gmra.mxu0 %v1196
        %v1289 = vpop.f32.mrf.mxu0
        %v1290 = vadd.f32 0.0, %v1289
        %1291 = vmatmul.f32.gmra.mxu0 %v1199
        %v1292 = vpop.f32.mrf.mxu0
        %v1293 = vadd.f32 0.0, %v1292
        %1294 = vmatmul.f32.gmra.mxu0 %v1201
        %v1295 = vpop.f32.mrf.mxu0
        %v1296 = vadd.f32 0.0, %v1295
        %1297 = vmatmul.f32.gmra.mxu0 %v1204
        %v1298 = vpop.f32.mrf.mxu0
        %v1299 = vadd.f32 0.0, %v1298
        %1300 = vmatmul.f32.gmra.mxu0 %v1206
        %v1301 = vpop.f32.mrf.mxu0
        %v1302 = vadd.f32 0.0, %v1301
        %1303 = vmatmul.f32.gmra.mxu0 %v1209
        %v1304 = vpop.f32.mrf.mxu0
        %v1305 = vadd.f32 0.0, %v1304
        %1306 = vmatmul.f32.gmra.mxu0 %v1211
        %v1307 = vpop.f32.mrf.mxu0
        %v1308 = vadd.f32 0.0, %v1307
        %1309 = vdwg.mxu0
        %v1310 = vadd.f32 %v1156, %v1263
        %v1311 = vadd.f32 %v1157, %v1266
        %v1312 = vadd.f32 %v1158, %v1269
        %v1313 = vadd.f32 %v1159, %v1272
        %v1314 = vadd.f32 %v1160, %v1275
        %v1315 = vadd.f32 %v1161, %v1278
        %v1316 = vadd.f32 %v1162, %v1281
        %v1317 = vadd.f32 %v1163, %v1284
        %v1318 = vadd.f32 %v1164, %v1287
        %v1319 = vadd.f32 %v1165, %v1290
        %v1320 = vadd.f32 %v1166, %v1293
        %v1321 = vadd.f32 %v1167, %v1296
        %v1322 = vadd.f32 %v1168, %v1299
        %v1323 = vadd.f32 %v1169, %v1302
        %v1324 = vadd.f32 %v1170, %v1305
        %v1325 = vadd.f32 %v1171, %v1308
        %v1326 = vadd.f32 %v281, %v1310
        %v1327 = vadd.f32 %v282, %v1311
        %v1328 = vadd.f32 %v283, %v1312
        %v1329 = vadd.f32 %v284, %v1313
        %v1330 = vadd.f32 %v285, %v1314
        %v1331 = vadd.f32 %v286, %v1315
        %v1332 = vadd.f32 %v287, %v1316
        %v1333 = vadd.f32 %v288, %v1317
        %v1334 = vadd.f32 %v289, %v1318
        %v1335 = vadd.f32 %v290, %v1319
        %v1336 = vadd.f32 %v291, %v1320
        %v1337 = vadd.f32 %v292, %v1321
        %v1338 = vadd.f32 %v293, %v1322
        %v1339 = vadd.f32 %v294, %v1323
        %v1340 = vadd.f32 %v295, %v1324
        %v1341 = vadd.f32 %v296, %v1325
        %1342 = vst [vmem:[%s278] sm:$0xff] %v1326
        %1343 = vst [vmem:[%s278 + $0x8] sm:$0xff] %v1327
        %1344 = vst [vmem:[%s278 + $0x10] sm:$0xff] %v1328
        %1345 = vst [vmem:[%s278 + $0x18] sm:$0xff] %v1329
        %1346 = vst [vmem:[%s278 + $0x20] sm:$0xff] %v1330
        %1347 = vst [vmem:[%s278 + $0x28] sm:$0xff] %v1331
        %1348 = vst [vmem:[%s278 + $0x30] sm:$0xff] %v1332
        %1349 = vst [vmem:[%s278 + $0x38] sm:$0xff] %v1333
        %1350 = vst [vmem:[%s278 + $0x40] sm:$0xff] %v1334
        %1351 = vst [vmem:[%s278 + $0x48] sm:$0xff] %v1335
        %1352 = vst [vmem:[%s278 + $0x50] sm:$0xff] %v1336
        %1353 = vst [vmem:[%s278 + $0x58] sm:$0xff] %v1337
        %1354 = vst [vmem:[%s278 + $0x60] sm:$0xff] %v1338
        %1355 = vst [vmem:[%s278 + $0x68] sm:$0xff] %v1339
        %1356 = vst [vmem:[%s278 + $0x70] sm:$0xff] %v1340
        %1357 = vst [vmem:[%s278 + $0x78] sm:$0xff] %v1341
        %s1358 = sand.u32 %s141, 1
        %s1359 = scalar_lea.sflag [#allocation4], %s1358
        %s1360 = sand.u32 %s141, 1
        %s1361 = smul.addr %s1360, 128
        %s1362 = scalar_lea.vmem [#allocation8], %s1361
        // Predicated region
        $region53: #{tpu_custom_call.1} parent=39 // pred_check
          %p1363 = pneg %p151
        $region54: #{tpu_custom_call.1} parent=39 // pred_check_branch
          %1365 = sbr.rel (%p1363) target = $region56
        $region55: #{tpu_custom_call.1} parent=39 // pred_region
          %s1366 = smul.u32 8, %s23
          %1368 = vsyncadd %s1359, 0
          %s1369 = smul.addr %s1366, 2
          %s1370 = smul.addr %s1369, 8
          %s1371 = scalar_lea.hbm %s5, %s1370
          %s1372 = sshll.u32 %s1362, 4
          %s1373 = int_to_ptr.vmem [resolvable:$true] %s1372
          %s1374 = sshll.u32 %s1371, 4
          %s1375 = int_to_ptr.hbm [resolvable:$true] %s1374
          %1380 = dma.vmem_to_hbm [thread:$0]  %s1373, 2048, %s1375, %s1359, 128, 128, 8
        $region56: #{tpu_custom_call.1} parent=39 // pred_fallthru
          _
      $region40: #{tpu_custom_call.1} parent=5 // pred_fallthru
        _
      %p1381 = scmp.le.s32.totalorder 2, %s18
      // Predicated region
      $region57: #{tpu_custom_call.1} parent=5 // pred_check
        %p1382 = pneg %p1381
      $region58: #{tpu_custom_call.1} parent=5 // pred_check_branch
        %1384 = sbr.rel (%p1382) target = $region60
      $region59: #{tpu_custom_call.1} parent=5 // pred_region
        %s1385 = ssub.s32 %s18, 2
        // Predicated region
        $region61: #{tpu_custom_call.1} parent=59 // pred_check
          %p1386 = pneg %p157
        $region62: #{tpu_custom_call.1} parent=59 // pred_check_branch
          %1388 = sbr.rel (%p1386) target = $region64
        $region63: #{tpu_custom_call.1} parent=59 // pred_region
          %s1389 = sand.u32 %s142, 1
          %s1390 = scalar_lea.sflag [#allocation4], %s1389
          %s1391 = sand.u32 %s142, 1
          %s1392 = smul.addr %s1391, 128
          %s1393 = scalar_lea.vmem [#allocation8], %s1392
          %1395 = dma.done %s1390, 2048
        $region64: #{tpu_custom_call.1} parent=59 // pred_fallthru
          _
      $region60: #{tpu_custom_call.1} parent=5 // pred_fallthru
        _
    $region6: #{tpu_custom_call.1} parent=1 // loop_footer
      %s22 = sadd.s32 1, %s18
    $region7: #{tpu_custom_call.1} parent=1 // loop_footer_branch
      %17 = sbr.rel target = $region3
    $region8: #{tpu_custom_call.1} parent=1 // loop_exit
      _
    %1396 = vsyncpa [#allocation3], 1
    %s1397 = scalar_lea.sflag [#allocation3], 1
    %1398 = vsyncpa %s1397, 1
    %1399 = vsyncpa [#allocation6], 1
    %1400 = vsyncpa [#allocation4], 1
    %s1401 = scalar_lea.sflag [#allocation4], 1
    %1402 = vsyncpa %s1401, 1

</llo_original>
